<compile_context>
chip_gen: v5e
topology: v5e:2x2
jax: 0.10.0
libtpu: 0.0.40
codegen_flags: <defaults>
</compile_context>

<pallas_src>
import jax
import jax.numpy as jnp
from jax.experimental import pallas as pl
from jax.experimental.pallas import tpu as pltpu


def _round_up(x, m):
    return (x + m - 1) // m * m


def _vmem_budget_bytes():
    """Usable per-kernel VMEM budget derived from the chip (v7x: 64 MiB/TC,
    v5e/v6e: 128 MiB), leaving headroom for Mosaic-internal scratch."""
    try:
        cap = int(pltpu.get_tpu_info().vmem_capacity_bytes)
    except Exception:
        cap = 64 << 20  # conservative default: v7x per-TensorCore
    return max(16 << 20, min((cap * 5) // 8, 96 << 20))


# ----------------------------------------------------------------------------
# Kernels
# ----------------------------------------------------------------------------
def _ws_matmul_kernel(x_ref, w_ref, o_ref):
    # Weight-stationary: w_ref maps to the same (K, N) block for every grid
    # step, so it is DMA'd once and stays resident; only X row tiles stream.
    o_ref[...] = jnp.dot(
        x_ref[...], w_ref[...], preferred_element_type=jnp.float32
    ).astype(o_ref.dtype)


def _tiled_matmul_kernel_f32out(x_ref, w_ref, o_ref):
    # f32 output: accumulate directly into the resident output block
    # (its index_map ignores k) -> no VMEM scratch needed.
    @pl.when(pl.program_id(2) == 0)
    def _():
        o_ref[...] = jnp.zeros_like(o_ref)

    o_ref[...] += jnp.dot(
        x_ref[...], w_ref[...], preferred_element_type=jnp.float32
    )


def _tiled_matmul_kernel_scratch(x_ref, w_ref, o_ref, acc_ref):
    k = pl.program_id(2)

    @pl.when(k == 0)
    def _():
        acc_ref[...] = jnp.zeros_like(acc_ref)

    acc_ref[...] += jnp.dot(
        x_ref[...], w_ref[...], preferred_element_type=jnp.float32
    )

    @pl.when(k == pl.num_programs(2) - 1)
    def _():
        o_ref[...] = acc_ref[...].astype(o_ref.dtype)


# ----------------------------------------------------------------------------
# Wrapper paths
# ----------------------------------------------------------------------------
_TINY_MACS = 1 << 16       # below this, a Pallas launch is pure overhead
_WS_SVT_BYTES = 24 << 20   # keep SVT weight-stationary when it fits comfortably


def _svd_w_de_weight_stationary(x, svt, out_dtype, cost):
    M, K = x.shape
    _, N = svt.shape
    x_bytes = jnp.dtype(x.dtype).itemsize
    w_bytes = jnp.dtype(svt.dtype).itemsize
    out_bytes = jnp.dtype(out_dtype).itemsize

    budget = _vmem_budget_bytes()
    svt_resident = K * N * w_bytes                   # single-buffered weight
    per_row = 2 * K * x_bytes + 2 * N * out_bytes    # X + out, double-buffered
    avail = budget - svt_resident - (2 << 20)
    if avail < 8 * per_row:
        return None                                  # does not fit: go tiled

    if M < 8:
        tm = M                                       # block == full array dim
    else:
        tm_budget = (avail // per_row) // 8 * 8
        # Target >= 8 row blocks (pipeline depth / megacore balance) while
        # keeping tm a multiple of 8 and <= 512, bounded by the VMEM budget.
        tm_target = max(8, _round_up(pl.cdiv(M, 8), 8))
        tm = max(8, min(512, int(tm_budget), tm_target))
    grid_m = pl.cdiv(M, tm)                          # ragged tail is masked

    vmem_needed = svt_resident + tm * per_row
    vmem_limit_1 = int(min(max(vmem_needed + vmem_needed // 2 + (2 << 20),
                               16 << 20), budget))
    vmem_limit_2 = int(min(vmem_limit_1 + svt_resident, budget))

    def call(weight_spec, vmem_limit):
        return pl.pallas_call(
            _ws_matmul_kernel,
            out_shape=jax.ShapeDtypeStruct((M, N), out_dtype),
            grid_spec=pltpu.PrefetchScalarGridSpec(
                num_scalar_prefetch=0,
                grid=(grid_m,),
                in_specs=[pl.BlockSpec((tm, K), lambda i: (i, 0)), weight_spec],
                out_specs=pl.BlockSpec((tm, N), lambda i: (i, 0)),
            ),
            compiler_params=pltpu.CompilerParams(
                dimension_semantics=("parallel",),
                vmem_limit_bytes=vmem_limit,
            ),
            cost_estimate=cost,
        )(x, svt)

    # NOTE: if N % 128 != 0 the output stores are masked (vst.msk); for a
    # fixed SVT, pad its N once at module-construction time to stay lane-dense.
    try:
        # Stationary weight with a constant index_map: one DMA, one buffer.
        return call(
            pl.BlockSpec((K, N), lambda i: (0, 0), pipeline_mode=pl.Buffered(1)),
            vmem_limit_1,
        )
    except Exception:
        # Fallback for jax versions without pipeline_mode / Buffered(1):
        # default double-buffered weight (still never re-DMA'd).
        return call(pl.BlockSpec((K, N), lambda i: (0, 0)), vmem_limit_2)


def _svd_w_de_tiled(x, svt, out_dtype, cost):
    M, K = x.shape
    _, N = svt.shape
    in_bytes = max(jnp.dtype(x.dtype).itemsize, jnp.dtype(svt.dtype).itemsize)
    out_bytes = jnp.dtype(out_dtype).itemsize
    use_scratch = jnp.dtype(out_dtype) != jnp.dtype(jnp.float32)

    budget = _vmem_budget_bytes()
    # 128-MiB-VMEM parts (v5e/v6e) afford 1024 output tiles; keep 512 on v7x
    # (64 MiB) so double-buffered inputs + output stay well inside VMEM.
    max_tile = 1024 if budget >= (64 << 20) else 512
    max_tk = 512

    tm = M if M < 8 else min(max_tile, _round_up(M, 8))
    tn = min(max_tile, _round_up(N, 128))

    # K is the reduction axis: ragged K blocks would pull undefined data into
    # the accumulation, so tk must divide (possibly padded) K exactly.
    Kp = K
    if K <= max_tk:
        tk = K
    else:
        tk = 0
        for cand in (512, 384, 256, 128):
            if K % cand == 0:
                tk = cand
                break
        if tk == 0:                       # rare: pathological K -> zero-pad K
            Kp = _round_up(K, 128)
            for cand in (512, 384, 256, 128):
                if Kp % cand == 0:
                    tk = cand
                    break
            x = jnp.pad(x, ((0, 0), (0, Kp - K)))
            svt = jnp.pad(svt, ((0, Kp - K), (0, 0)))

    def needed(tm_, tn_, tk_):
        acc = tm_ * tn_ * 4 if use_scratch else 0
        return (2 * (tm_ * tk_ + tk_ * tn_) * in_bytes
                + 2 * tm_ * tn_ * out_bytes + acc)

    # Shrink tiles if the working set would not fit the per-chip budget.
    while needed(tm, tn, tk) > budget - (2 << 20):
        if tk > 128 and (tk // 2) % 128 == 0 and Kp % (tk // 2) == 0:
            tk //= 2
        elif tn > 128:
            tn = max(128, _round_up(tn // 2, 128))
        elif tm > 8:
            tm = max(8, _round_up(tm // 2, 8))
        else:
            break

    gm, gn, gk = pl.cdiv(M, tm), pl.cdiv(N, tn), Kp // tk

    # Put the spatial axis with fewer blocks outermost; K stays innermost.
    if gn < gm:
        grid = (gn, gm, gk)
        x_map = lambda j, i, k: (i, k)
        w_map = lambda j, i, k: (k, j)
        o_map = lambda j, i, k: (i, j)
    else:
        grid = (gm, gn, gk)
        x_map = lambda i, j, k: (i, k)
        w_map = lambda i, j, k: (k, j)
        o_map = lambda i, j, k: (i, j)

    kernel = (_tiled_matmul_kernel_scratch if use_scratch
              else _tiled_matmul_kernel_f32out)
    scratch = [pltpu.VMEM((tm, tn), jnp.float32)] if use_scratch else []

    vmem_needed = needed(tm, tn, tk)
    vmem_limit = int(min(max(vmem_needed + vmem_needed // 2 + (2 << 20),
                             16 << 20), budget))

    return pl.pallas_call(
        kernel,
        out_shape=jax.ShapeDtypeStruct((M, N), out_dtype),
        grid_spec=pltpu.PrefetchScalarGridSpec(
            num_scalar_prefetch=0,
            grid=grid,
            in_specs=[pl.BlockSpec((tm, tk), x_map),
                      pl.BlockSpec((tk, tn), w_map)],
            out_specs=pl.BlockSpec((tm, tn), o_map),
            scratch_shapes=scratch,
        ),
        compiler_params=pltpu.CompilerParams(
            dimension_semantics=("parallel", "parallel", "arbitrary"),
            vmem_limit_bytes=vmem_limit,
        ),
        cost_estimate=cost,
    )(x, svt)


def svd_w_de(x, svt, *, compute_dtype=jnp.bfloat16, force_tiled=False):
    """Pallas implementation of Svd_W_de.forward: X @ SVT.

    compute_dtype: dtype the operands are streamed/multiplied in (default
      bfloat16 — native MXU input, halves HBM traffic).  Accumulation is
      always f32 and the output keeps the promoted input dtype.  Pass
      compute_dtype=None for exact f32 compute.
    """
    M, K = x.shape
    K2, N = svt.shape
    assert K == K2, "inner dims must match"

    out_dtype = jnp.promote_types(x.dtype, svt.dtype)

    if compute_dtype is not None and jnp.issubdtype(out_dtype, jnp.floating):
        cd = jnp.dtype(compute_dtype)
        # Only downcast (never upcast) the streamed operands.
        if jnp.dtype(x.dtype).itemsize > cd.itemsize:
            x = x.astype(cd)
        if jnp.dtype(svt.dtype).itemsize > cd.itemsize:
            svt = svt.astype(cd)

    # Tiny problems: the fused XLA matmul beats any kernel launch.
    if M * N * K <= _TINY_MACS and not force_tiled:
        return jnp.dot(
            x, svt, preferred_element_type=jnp.float32
        ).astype(out_dtype)

    x_bytes = jnp.dtype(x.dtype).itemsize
    w_bytes = jnp.dtype(svt.dtype).itemsize
    out_bytes = jnp.dtype(out_dtype).itemsize
    cost = pl.CostEstimate(
        flops=2 * M * N * K,
        transcendentals=0,
        bytes_accessed=x_bytes * M * K + w_bytes * K * N + out_bytes * M * N,
    )

    if not force_tiled and K * N * w_bytes <= _WS_SVT_BYTES:
        out = _svd_w_de_weight_stationary(x, svt, out_dtype, cost)
        if out is not None:
            return out
    return _svd_w_de_tiled(x, svt, out_dtype, cost)


if __name__ == "__main__":
    key = jax.random.PRNGKey(0)
    kx, kw, kx2, kw2 = jax.random.split(key, 4)

    # Decoder-like shapes: 512 latent rows (K=64) -> 256 output features.
    M, K, N = 512, 64, 256
    x = jax.random.normal(kx, (M, K), dtype=jnp.float32)
    svt = jax.random.normal(kw, (K, N), dtype=jnp.float32)  # fixed "V^T" param

    ref_f32 = x @ svt
    ref_bf16 = jnp.dot(x.astype(jnp.bfloat16), svt.astype(jnp.bfloat16),
                       preferred_element_type=jnp.float32)

    # 1) Weight-stationary fast path, default bf16 compute (f32 accumulation).
    out = jax.block_until_ready(svd_w_de(x, svt))
    assert out.shape == (M, N) and out.dtype == ref_f32.dtype
    assert jnp.allclose(out, ref_bf16, atol=2e-3, rtol=2e-3)

    # 2) Weight-stationary path, exact f32 compute.
    out32 = jax.block_until_ready(svd_w_de(x, svt, compute_dtype=None))
    assert jnp.allclose(out32, ref_f32, atol=1e-4, rtol=1e-4)

    # 3) Ragged M (no wrapper-side pad): edge block handled by masked stores.
    Mr = 300
    outr = jax.block_until_ready(svd_w_de(x[:Mr], svt))
    assert outr.shape == (Mr, N)
    assert jnp.allclose(outr, ref_bf16[:Mr], atol=2e-3, rtol=2e-3)

    # 4) Tiled K-reduction fallback (multi-step K), exact f32 compute.
    M2, K2, N2 = 384, 1024, 384
    x2 = jax.random.normal(kx2, (M2, K2), dtype=jnp.float32)
    svt2 = jax.random.normal(kw2, (K2, N2), dtype=jnp.float32)
    out2 = jax.block_until_ready(
        svd_w_de(x2, svt2, compute_dtype=None, force_tiled=True))
    assert jnp.allclose(out2, x2 @ svt2, atol=5e-3, rtol=1e-4)

    print("KERNEL_OK")
</pallas_src>

<mosaic_0001>
module attributes {stable_mosaic.version = 11 : i64} {
  func.func @_ws_matmul_kernel(%arg0: i32, %arg1: memref<64x64xbf16, #tpu.memory_space<vmem>>, %arg2: memref<64x256xbf16, #tpu.memory_space<vmem>>, %arg3: memref<64x256xf32, #tpu.memory_space<vmem>>) attributes {dimension_semantics = [#tpu.dimension_semantics<parallel>], iteration_bounds = array<i64: 8>, scalar_prefetch = 0 : i64, scratch_operands = 0 : i64, tpu.core_type = #tpu.core_type<tc>, window_params = [{transform_indices = @transform_0, window_bounds = array<i64: 64, 64>}, {pipeline_mode = #tpu.pipeline_mode<synchronous>, transform_indices = @transform_1, window_bounds = array<i64: 64, 256>}, {transform_indices = @transform_2, window_bounds = array<i64: 64, 256>}]} {
    %c0 = arith.constant 0 : index
    %c0_0 = arith.constant 0 : index
    %0 = vector.load %arg1[%c0, %c0_0] : memref<64x64xbf16, #tpu.memory_space<vmem>>, vector<64x64xbf16>
    %c0_1 = arith.constant 0 : index
    %c0_2 = arith.constant 0 : index
    %1 = vector.load %arg2[%c0_1, %c0_2] : memref<64x256xbf16, #tpu.memory_space<vmem>>, vector<64x256xbf16>
    %cst = arith.constant dense<0.000000e+00> : vector<64x256xf32>
    %2 = tpu.matmul %0, %1, %cst {dimension_numbers = #tpu.dot_dimension_numbers<[1], [0], [0], [1], [0, 0, 1, 1], [], []>} : vector<64x64xbf16>, vector<64x256xbf16>, vector<64x256xf32> -> vector<64x256xf32>
    %c0_3 = arith.constant 0 : index
    %c0_4 = arith.constant 0 : index
    %3 = vector.load %arg3[%c0_3, %c0_4] : memref<64x256xf32, #tpu.memory_space<vmem>>, vector<64x256xf32>
    tpu.vector_store %arg3[%c0_3, %c0_4], %2 {strides = array<i32>} : memref<64x256xf32, #tpu.memory_space<vmem>>, vector<64x256xf32>,
    return
  }
  func.func @transform_0(%arg0: i32) -> (i32, i32) {
    %c0_i32 = arith.constant 0 : i32
    %c0_i32_0 = arith.constant 0 : i32
    return %arg0, %c0_i32 : i32, i32
  }
  func.func @transform_1(%arg0: i32) -> (i32, i32) {
    %c0_i32 = arith.constant 0 : i32
    %c0_i32_0 = arith.constant 0 : i32
    %c0_i32_1 = arith.constant 0 : i32
    return %c0_i32, %c0_i32_0 : i32, i32
  }
  func.func @transform_2(%arg0: i32) -> (i32, i32) {
    %c0_i32 = arith.constant 0 : i32
    %c0_i32_0 = arith.constant 0 : i32
    return %arg0, %c0_i32 : i32, i32
  }
}

module attributes {stable_mosaic.version = 11 : i64} {
  func.func @_ws_matmul_kernel(%arg0: i32, %arg1: memref<64x64xbf16, #tpu.memory_space<vmem>>, %arg2: memref<64x256xbf16, #tpu.memory_space<vmem>>, %arg3: memref<64x256xf32, #tpu.memory_space<vmem>>) attributes {dimension_semantics = [#tpu.dimension_semantics<parallel>], iteration_bounds = array<i64: 8>, scalar_prefetch = 0 : i64, scratch_operands = 0 : i64, tpu.core_type = #tpu.core_type<tc>, window_params = [{transform_indices = @transform_0, window_bounds = array<i64: 64, 64>}, {pipeline_mode = #tpu.pipeline_mode<synchronous>, transform_indices = @transform_1, window_bounds = array<i64: 64, 256>}, {transform_indices = @transform_2, window_bounds = array<i64: 64, 256>}]} {
    %c0 = arith.constant 0 : index
    %c0_0 = arith.constant 0 : index
    %0 = vector.load %arg1[%c0, %c0_0] : memref<64x64xbf16, #tpu.memory_space<vmem>>, vector<64x64xbf16>
    %c0_1 = arith.constant 0 : index
    %c0_2 = arith.constant 0 : index
    %1 = vector.load %arg2[%c0_1, %c0_2] : memref<64x256xbf16, #tpu.memory_space<vmem>>, vector<64x256xbf16>
    %cst = arith.constant dense<0.000000e+00> : vector<64x256xf32>
    %2 = tpu.matmul %0, %1, %cst {dimension_numbers = #tpu.dot_dimension_numbers<[1], [0], [0], [1], [0, 0, 1, 1], [], []>} : vector<64x64xbf16>, vector<64x256xbf16>, vector<64x256xf32> -> vector<64x256xf32>
    %c0_3 = arith.constant 0 : index
    %c0_4 = arith.constant 0 : index
    %3 = vector.load %arg3[%c0_3, %c0_4] : memref<64x256xf32, #tpu.memory_space<vmem>>, vector<64x256xf32>
    tpu.vector_store %arg3[%c0_3, %c0_4], %2 {strides = array<i32>} : memref<64x256xf32, #tpu.memory_space<vmem>>, vector<64x256xf32>,
    return
  }
  func.func @transform_0(%arg0: i32) -> (i32, i32) {
    %c0_i32 = arith.constant 0 : i32
    %c0_i32_0 = arith.constant 0 : i32
    return %arg0, %c0_i32 : i32, i32
  }
  func.func @transform_1(%arg0: i32) -> (i32, i32) {
    %c0_i32 = arith.constant 0 : i32
    %c0_i32_0 = arith.constant 0 : i32
    %c0_i32_1 = arith.constant 0 : i32
    return %c0_i32, %c0_i32_0 : i32, i32
  }
  func.func @transform_2(%arg0: i32) -> (i32, i32) {
    %c0_i32 = arith.constant 0 : i32
    %c0_i32_0 = arith.constant 0 : i32
    return %arg0, %c0_i32 : i32, i32
  }
}

</mosaic_0001>

<llo_original>
// kernel: tpu_custom_call.1
$region0: #{tpu_custom_call.1}
  #allocation0 [shape = 'u32[]', space=smem, size = 0x4, offset = 0x4, fixed_abs, tag = 'smem constant byte address 0x4 - core index']
  #allocation1 [shape = 'u32[72,128]{1,0:T(1,128)}', space=vmem, size = 0x9000, scoped, tag = 'internal scratch']
  %s0 = inlined_call_operand.vmem [shape: bf16[512,64], index: 0, kind: input, shape index: {}]
  %s1 = inlined_call_operand.vmem [shape: bf16[64,256], index: 1, kind: input, shape index: {}]
  %s2 = inlined_call_operand.hbm [shape: f32[512,256], index: 2, kind: output, shape index: {}]
  %s3 = sld [smem:[#allocation0]]
  $region41: #{tpu_custom_call.1} parent=0
    _
  %s5 = ssub.s32 1, %s3
  %s6 = scalar_select 0, %s5, %s3
  $region1: #{tpu_custom_call.1} parent=0
    #allocation2 [shape = 'u8[131072]{0}', space=vmem, size = 0x20000, scoped, tag = 'output window, operand 0']
    #allocation3 [shape = 's32[2]{0}', space=sflag, size = 0x8, scoped, tag = 'scoped memory for tpu_custom_call.1']
    %7 = vsyncpa [#allocation3], 0
    %s8 = scalar_lea.sflag [#allocation3], 1
    %9 = vsyncpa %s8, 0
    loop: start=0, step=1, limit=10
    $region2: #{tpu_custom_call.1} parent=1 // loop_pre_header
      _
    $region3: #{tpu_custom_call.1} parent=1 // loop_header
      %s11 = sphi 0, %s15
      %p12 = scmp.ge.s32.totalorder %s11, 10
      %s21 = sphi 0, %s23
      %s24 = sphi 0, %s21
      %s25 = sphi 0, %s24
      %s41 = sphi 0, %s25
      %s45 = sphi 0, %s45
      %s47 = sphi 0, %s45
      %s48 = sphi 0, %s47
      %s62 = sphi 0, %s48
      %s68 = sphi 0, %s70
      %s71 = sphi 0, %s68
      %s72 = sphi 0, %s71
      %s88 = sphi 0, %s72
    $region4: #{tpu_custom_call.1} parent=1 // loop_header_branch
      %14 = sbr.rel (%p12) target = $region8
    $region5: #{tpu_custom_call.1} parent=1 // loop_body
      %s16 = ssub.s32 %s11, 1
      %s17 = ssub.s32 %s11, 2
      %s18 = sadd.s32 %s11, 1
      %s19 = ssub.s32 %s11, %s18
      %p20 = scmp.eq.s32.totalorder %s19, 0
      %s22 = sadd.s32 %s21, 1
      %s23 = scalar_select %p20, %s21, %s22
      %p26 = pneg %p20
      %p27 = scmp.eq.s32.totalorder %s11, 7
      %p28 = por %p26, %p27
      %p29 = scmp.ne.s32.totalorder %s21, %s24
      %p30 = scmp.eq.s32.totalorder %s11, 0
      %p31 = por %p29, %p30
      %p32 = scmp.ne.s32.totalorder %s21, %s24
      %p33 = scmp.eq.s32.totalorder %s16, 7
      %p34 = por %p32, %p33
      %p35 = scmp.ne.s32.totalorder %s24, %s25
      %p36 = scmp.eq.s32.totalorder %s16, 0
      %p37 = por %p35, %p36
      %p38 = scmp.ne.s32.totalorder %s24, %s25
      %p39 = scmp.eq.s32.totalorder %s17, 7
      %p40 = por %p38, %p39
      %p42 = scmp.ne.s32.totalorder %s25, %s41
      %p43 = scmp.eq.s32.totalorder %s17, 0
      %p44 = por %p42, %p43
      %s46 = sadd.s32 %s45, 1
      %p49 = scmp.eq.s32.totalorder %s11, 7
      %p50 = scmp.ne.s32.totalorder %s45, %s47
      %p51 = scmp.eq.s32.totalorder %s11, 0
      %p52 = por %p50, %p51
      %p53 = scmp.ne.s32.totalorder %s45, %s47
      %p54 = scmp.eq.s32.totalorder %s16, 7
      %p55 = por %p53, %p54
      %p56 = scmp.ne.s32.totalorder %s47, %s48
      %p57 = scmp.eq.s32.totalorder %s16, 0
      %p58 = por %p56, %p57
      %p59 = scmp.ne.s32.totalorder %s47, %s48
      %p60 = scmp.eq.s32.totalorder %s17, 7
      %p61 = por %p59, %p60
      %p63 = scmp.ne.s32.totalorder %s48, %s62
      %p64 = scmp.eq.s32.totalorder %s17, 0
      %p65 = por %p63, %p64
      %s66 = ssub.s32 %s11, %s18
      %p67 = scmp.eq.s32.totalorder %s66, 0
      %s69 = sadd.s32 %s68, 1
      %s70 = scalar_select %p67, %s68, %s69
      %p73 = pneg %p67
      %p74 = scmp.eq.s32.totalorder %s11, 7
      %p75 = por %p73, %p74
      %p76 = scmp.ne.s32.totalorder %s68, %s71
      %p77 = scmp.eq.s32.totalorder %s11, 0
      %p78 = por %p76, %p77
      %p79 = scmp.ne.s32.totalorder %s68, %s71
      %p80 = scmp.eq.s32.totalorder %s16, 7
      %p81 = por %p79, %p80
      %p82 = scmp.ne.s32.totalorder %s71, %s72
      %p83 = scmp.eq.s32.totalorder %s16, 0
      %p84 = por %p82, %p83
      %p85 = scmp.ne.s32.totalorder %s71, %s72
      %p86 = scmp.eq.s32.totalorder %s17, 7
      %p87 = por %p85, %p86
      %p89 = scmp.ne.s32.totalorder %s72, %s88
      %p90 = scmp.eq.s32.totalorder %s17, 0
      %p91 = por %p89, %p90
      %p92 = scmp.le.s32.totalorder 1, %s11
      %p93 = scmp.lt.s32.totalorder %s11, 9
      %p94 = pnand %p92, %p93
      %p95 = pneg %p94
      // Predicated region
      $region9: #{tpu_custom_call.1} parent=5 // pred_check
        _
      $region10: #{tpu_custom_call.1} parent=5 // pred_check_branch
        %97 = sbr.rel (%p94) target = $region12
      $region11: #{tpu_custom_call.1} parent=5 // pred_region
        %s98 = ssub.s32 %s11, 1
        // Predicated region
        $region13: #{tpu_custom_call.1} parent=11 // pred_check
          %p99 = pneg %p58
        $region14: #{tpu_custom_call.1} parent=11 // pred_check_branch
          %101 = sbr.rel (%p99) target = $region16
        $region15: #{tpu_custom_call.1} parent=11 // pred_region
          _
        $region16: #{tpu_custom_call.1} parent=11 // pred_fallthru
          _
      $region12: #{tpu_custom_call.1} parent=5 // pred_fallthru
        _
      %p102 = scmp.lt.s32.totalorder %s11, 8
      // Predicated region
      $region17: #{tpu_custom_call.1} parent=5 // pred_check
        %p103 = pneg %p102
      $region18: #{tpu_custom_call.1} parent=5 // pred_check_branch
        %105 = sbr.rel (%p103) target = $region20
      $region19: #{tpu_custom_call.1} parent=5 // pred_region
        // Predicated region
        $region21: #{tpu_custom_call.1} parent=19 // pred_check
          %p106 = pneg %p31
        $region22: #{tpu_custom_call.1} parent=19 // pred_check_branch
          %108 = sbr.rel (%p106) target = $region24
        $region23: #{tpu_custom_call.1} parent=19 // pred_region
          %s109 = smul.u32 8, %s11
          %p110 = scmp.lt.s32.totalorder %s109, 63
          %s111 = scalar_select %p110, %s109, 63
          %s112 = smul.addr %s111, 4
          %s113 = scalar_lea.vmem %s0, %s112
          %s114 = smul.u32 8, %s11
        $region24: #{tpu_custom_call.1} parent=19 // pred_fallthru
          _
      $region20: #{tpu_custom_call.1} parent=5 // pred_fallthru
        _
      %p115 = scmp.le.s32.totalorder 1, %s11
      %p116 = scmp.lt.s32.totalorder %s11, 9
      %p117 = pnand %p115, %p116
      %p118 = pneg %p117
      // Predicated region
      $region25: #{tpu_custom_call.1} parent=5 // pred_check
        _
      $region26: #{tpu_custom_call.1} parent=5 // pred_check_branch
        %120 = sbr.rel (%p117) target = $region28
      $region27: #{tpu_custom_call.1} parent=5 // pred_region
        %s121 = ssub.s32 %s11, 1
        %s122 = smul.u32 8, %s16
        %p123 = scmp.lt.s32.totalorder %s122, 63
        %s124 = scalar_select %p123, %s122, 63
        %s125 = smul.addr %s124, 4
        %s126 = scalar_lea.vmem %s0, %s125
        %p127 = pneg %p37
        %p128 = pneg %p34
        %p129 = pneg %p58
        %p130 = pneg %p55
        %p131 = pneg %p84
        %p132 = pneg %p81
        %s133 = sand.u32 %s71, 1
        %s134 = scalar_lea.sflag [#allocation3], %s133
        %s135 = sand.u32 %s71, 1
        %s136 = smul.addr %s135, 128
        %s137 = scalar_lea.vmem [#allocation2], %s136
        %s138 = smul.u32 8, %s16
        %p139 = scmp.lt.s32.totalorder %s138, 63
        %s140 = scalar_select %p139, %s138, 63
        %s141 = smul.addr %s140, 4
        %s142 = scalar_lea.vmem %s0, %s141
        %s143 = smul.u32 8, %s16
        %s144 = smul.u32 8, %s16
        %v146 = vld [vmem:[%s142] sm:$0xf]
        %v147 = vld [vmem:[%s142 + $0x4] sm:$0xf]
        %v148 = vld [vmem:[%s142 + $0x8] sm:$0xf]
        %v149 = vld [vmem:[%s142 + $0xc] sm:$0xf]
        %v150 = vld [vmem:[%s142 + $0x10] sm:$0xf]
        %v151 = vld [vmem:[%s142 + $0x14] sm:$0xf]
        %v152 = vld [vmem:[%s142 + $0x18] sm:$0xf]
        %v153 = vld [vmem:[%s142 + $0x1c] sm:$0xf]
        %v154 = vld [vmem:[%s1] sm:$0xff]
        %v155 = vld [vmem:[%s1 + $0x8] sm:$0xff]
        %v156 = vld [vmem:[%s1 + $0x10] sm:$0xff]
        %v157 = vld [vmem:[%s1 + $0x18] sm:$0xff]
        %v158 = vld [vmem:[%s1 + $0x20] sm:$0xff]
        %v159 = vld [vmem:[%s1 + $0x28] sm:$0xff]
        %v160 = vld [vmem:[%s1 + $0x30] sm:$0xff]
        %v161 = vld [vmem:[%s1 + $0x38] sm:$0xff]
        %v170 = vunpack.c.l.b16 %v146
        %v171 = vunpack.c.l.b16 %v147
        %v172 = vunpack.c.l.b16 %v148
        %v173 = vunpack.c.l.b16 %v149
        %v174 = vunpack.c.l.b16 %v150
        %v175 = vunpack.c.l.b16 %v151
        %v176 = vunpack.c.l.b16 %v152
        %v177 = vunpack.c.l.b16 %v153
        %v178 = vpack.c.b16 %v171, %v170
        %v179 = vpack.c.b16 %v173, %v172
        %v180 = vpack.c.b16 %v175, %v174
        %v181 = vpack.c.b16 %v177, %v176
        %v190 = vunpack.c.l.b16 %v154
        %v191 = vunpack.c.h.b16 %v154
        %v192 = vunpack.c.l.b16 %v155
        %v193 = vunpack.c.h.b16 %v155
        %v194 = vunpack.c.l.b16 %v156
        %v195 = vunpack.c.h.b16 %v156
        %v196 = vunpack.c.l.b16 %v157
        %v197 = vunpack.c.h.b16 %v157
        %v198 = vunpack.c.l.b16 %v158
        %v199 = vunpack.c.h.b16 %v158
        %v200 = vunpack.c.l.b16 %v159
        %v201 = vunpack.c.h.b16 %v159
        %v202 = vunpack.c.l.b16 %v160
        %v203 = vunpack.c.h.b16 %v160
        %v204 = vunpack.c.l.b16 %v161
        %v205 = vunpack.c.h.b16 %v161
        %v206 = vpack.c.b16 %v192, %v190
        %v207 = vpack.c.b16 %v193, %v191
        %v208 = vpack.c.b16 %v196, %v194
        %v209 = vpack.c.b16 %v197, %v195
        %v210 = vpack.c.b16 %v200, %v198
        %v211 = vpack.c.b16 %v201, %v199
        %v212 = vpack.c.b16 %v204, %v202
        %v213 = vpack.c.b16 %v205, %v203
        %vm222 = vcmask 523264
        %v224 = vsel %vm222, %v178, 0
        %v227 = vsel %vm222, %v179, 0
        %v230 = vsel %vm222, %v180, 0
        %v233 = vsel %vm222, %v181, 0
        %235 = vmatpush.bf16.msra.mxu0 0
        %236 = vmatpush.bf16.msra.mxu0 0
        %237 = vmatpush.bf16.msra.mxu0 0
        %238 = vmatpush.bf16.msra.mxu0 0
        %239 = vmatpush.bf16.msra.mxu0 %v212
        %240 = vmatpush.bf16.msra.mxu0 %v210
        %241 = vmatpush.bf16.msra.mxu0 %v208
        %242 = vmatpush.bf16.msra.mxu0 %v206
        %243 = vmatmul.bf16.gmra.mxu0 %v224
        %v244 = vpop.f32.mrf.mxu0
        %v245 = vadd.f32 0.0, %v244
        %v246 = vpop.f32.mrf.mxu0
        %v247 = vadd.f32 0.0, %v246
        %248 = vmatmul.bf16.gmra.mxu0 %v227
        %v249 = vpop.f32.mrf.mxu0
        %v250 = vadd.f32 0.0, %v249
        %v251 = vpop.f32.mrf.mxu0
        %v252 = vadd.f32 0.0, %v251
        %253 = vmatmul.bf16.gmra.mxu0 %v230
        %v254 = vpop.f32.mrf.mxu0
        %v255 = vadd.f32 0.0, %v254
        %v256 = vpop.f32.mrf.mxu0
        %v257 = vadd.f32 0.0, %v256
        %258 = vmatmul.bf16.gmra.mxu0 %v233
        %v259 = vpop.f32.mrf.mxu0
        %v260 = vadd.f32 0.0, %v259
        %v261 = vpop.f32.mrf.mxu0
        %v262 = vadd.f32 0.0, %v261
        %263 = vdwg.mxu0
        %264 = vmatpush.bf16.msra.mxu0 0
        %265 = vmatpush.bf16.msra.mxu0 0
        %266 = vmatpush.bf16.msra.mxu0 0
        %267 = vmatpush.bf16.msra.mxu0 0
        %268 = vmatpush.bf16.msra.mxu0 %v213
        %269 = vmatpush.bf16.msra.mxu0 %v211
        %270 = vmatpush.bf16.msra.mxu0 %v209
        %271 = vmatpush.bf16.msra.mxu0 %v207
        %272 = vmatmul.bf16.gmra.mxu0 %v224
        %v273 = vpop.f32.mrf.mxu0
        %v274 = vadd.f32 0.0, %v273
        %v275 = vpop.f32.mrf.mxu0
        %v276 = vadd.f32 0.0, %v275
        %277 = vmatmul.bf16.gmra.mxu0 %v227
        %v278 = vpop.f32.mrf.mxu0
        %v279 = vadd.f32 0.0, %v278
        %v280 = vpop.f32.mrf.mxu0
        %v281 = vadd.f32 0.0, %v280
        %282 = vmatmul.bf16.gmra.mxu0 %v230
        %v283 = vpop.f32.mrf.mxu0
        %v284 = vadd.f32 0.0, %v283
        %v285 = vpop.f32.mrf.mxu0
        %v286 = vadd.f32 0.0, %v285
        %287 = vmatmul.bf16.gmra.mxu0 %v233
        %v288 = vpop.f32.mrf.mxu0
        %v289 = vadd.f32 0.0, %v288
        %v290 = vpop.f32.mrf.mxu0
        %v291 = vadd.f32 0.0, %v290
        %292 = vdwg.mxu0
        %293 = vst [vmem:[%s137] sm:$0xff] %v245
        %294 = vst [vmem:[%s137 + $0x8] sm:$0xff] %v274
        %295 = vst [vmem:[%s137 + $0x10] sm:$0xff] %v247
        %296 = vst [vmem:[%s137 + $0x18] sm:$0xff] %v276
        %297 = vst [vmem:[%s137 + $0x20] sm:$0xff] %v250
        %298 = vst [vmem:[%s137 + $0x28] sm:$0xff] %v279
        %299 = vst [vmem:[%s137 + $0x30] sm:$0xff] %v252
        %300 = vst [vmem:[%s137 + $0x38] sm:$0xff] %v281
        %301 = vst [vmem:[%s137 + $0x40] sm:$0xff] %v255
        %302 = vst [vmem:[%s137 + $0x48] sm:$0xff] %v284
        %303 = vst [vmem:[%s137 + $0x50] sm:$0xff] %v257
        %304 = vst [vmem:[%s137 + $0x58] sm:$0xff] %v286
        %305 = vst [vmem:[%s137 + $0x60] sm:$0xff] %v260
        %306 = vst [vmem:[%s137 + $0x68] sm:$0xff] %v289
        %307 = vst [vmem:[%s137 + $0x70] sm:$0xff] %v262
        %308 = vst [vmem:[%s137 + $0x78] sm:$0xff] %v291
        %s309 = sand.u32 %s71, 1
        %s310 = scalar_lea.sflag [#allocation3], %s309
        %s311 = sand.u32 %s71, 1
        %s312 = smul.addr %s311, 128
        %s313 = scalar_lea.vmem [#allocation2], %s312
        // Predicated region
        $region29: #{tpu_custom_call.1} parent=27 // pred_check
          %p314 = pneg %p81
        $region30: #{tpu_custom_call.1} parent=27 // pred_check_branch
          %316 = sbr.rel (%p314) target = $region32
        $region31: #{tpu_custom_call.1} parent=27 // pred_region
          %s317 = smul.u32 8, %s16
          %319 = vsyncadd %s310, 0
          %s320 = smul.addr %s317, 2
          %s321 = smul.addr %s320, 8
          %s322 = scalar_lea.hbm %s2, %s321
          %s323 = sshll.u32 %s313, 4
          %s324 = int_to_ptr.vmem [resolvable:$true] %s323
          %s325 = sshll.u32 %s322, 4
          %s326 = int_to_ptr.hbm [resolvable:$true] %s325
          %331 = dma.vmem_to_hbm [thread:$0]  %s324, 2048, %s326, %s310, 256, 256, 16
        $region32: #{tpu_custom_call.1} parent=27 // pred_fallthru
          _
      $region28: #{tpu_custom_call.1} parent=5 // pred_fallthru
        _
      %p332 = scmp.le.s32.totalorder 2, %s11
      // Predicated region
      $region33: #{tpu_custom_call.1} parent=5 // pred_check
        %p333 = pneg %p332
      $region34: #{tpu_custom_call.1} parent=5 // pred_check_branch
        %335 = sbr.rel (%p333) target = $region36
      $region35: #{tpu_custom_call.1} parent=5 // pred_region
        %s336 = ssub.s32 %s11, 2
        // Predicated region
        $region37: #{tpu_custom_call.1} parent=35 // pred_check
          %p337 = pneg %p87
        $region38: #{tpu_custom_call.1} parent=35 // pred_check_branch
          %339 = sbr.rel (%p337) target = $region40
        $region39: #{tpu_custom_call.1} parent=35 // pred_region
          %s340 = sand.u32 %s72, 1
          %s341 = scalar_lea.sflag [#allocation3], %s340
          %s342 = sand.u32 %s72, 1
          %s343 = smul.addr %s342, 128
          %s344 = scalar_lea.vmem [#allocation2], %s343
          %346 = dma.done %s341, 2048
        $region40: #{tpu_custom_call.1} parent=35 // pred_fallthru
          _
      $region36: #{tpu_custom_call.1} parent=5 // pred_fallthru
        _
    $region6: #{tpu_custom_call.1} parent=1 // loop_footer
      %s15 = sadd.s32 1, %s11
    $region7: #{tpu_custom_call.1} parent=1 // loop_footer_branch
      %10 = sbr.rel target = $region3
    $region8: #{tpu_custom_call.1} parent=1 // loop_exit
      _
    %347 = vsyncpa [#allocation3], 1
    %s348 = scalar_lea.sflag [#allocation3], 1
    %349 = vsyncpa %s348, 1

// kernel: tpu_custom_call.1
$region0: #{tpu_custom_call.1}
  #allocation0 [shape = 'u32[]', space=smem, size = 0x4, offset = 0x4, fixed_abs, tag = 'smem constant byte address 0x4 - core index']
  #allocation1 [shape = 'u32[72,128]{1,0:T(1,128)}', space=vmem, size = 0x9000, scoped, tag = 'internal scratch']
  %s0 = inlined_call_operand.vmem [shape: bf16[512,64], index: 0, kind: input, shape index: {}]
  %s1 = inlined_call_operand.vmem [shape: bf16[64,256], index: 1, kind: input, shape index: {}]
  %s2 = inlined_call_operand.hbm [shape: f32[512,256], index: 2, kind: output, shape index: {}]
  %s3 = sld [smem:[#allocation0]]
  $region41: #{tpu_custom_call.1} parent=0
    _
  %s5 = ssub.s32 1, %s3
  %s6 = scalar_select 0, %s5, %s3
  $region1: #{tpu_custom_call.1} parent=0
    #allocation2 [shape = 'u8[131072]{0}', space=vmem, size = 0x20000, scoped, tag = 'output window, operand 0']
    #allocation3 [shape = 's32[2]{0}', space=sflag, size = 0x8, scoped, tag = 'scoped memory for tpu_custom_call.1']
    %7 = vsyncpa [#allocation3], 0
    %s8 = scalar_lea.sflag [#allocation3], 1
    %9 = vsyncpa %s8, 0
    loop: start=0, step=1, limit=10
    $region2: #{tpu_custom_call.1} parent=1 // loop_pre_header
      _
    $region3: #{tpu_custom_call.1} parent=1 // loop_header
      %s11 = sphi 0, %s15
      %p12 = scmp.ge.s32.totalorder %s11, 10
      %s21 = sphi 0, %s23
      %s24 = sphi 0, %s21
      %s25 = sphi 0, %s24
      %s41 = sphi 0, %s25
      %s45 = sphi 0, %s45
      %s47 = sphi 0, %s45
      %s48 = sphi 0, %s47
      %s62 = sphi 0, %s48
      %s68 = sphi 0, %s70
      %s71 = sphi 0, %s68
      %s72 = sphi 0, %s71
      %s88 = sphi 0, %s72
    $region4: #{tpu_custom_call.1} parent=1 // loop_header_branch
      %14 = sbr.rel (%p12) target = $region8
    $region5: #{tpu_custom_call.1} parent=1 // loop_body
      %s16 = ssub.s32 %s11, 1
      %s17 = ssub.s32 %s11, 2
      %s18 = sadd.s32 %s11, 1
      %s19 = ssub.s32 %s11, %s18
      %p20 = scmp.eq.s32.totalorder %s19, 0
      %s22 = sadd.s32 %s21, 1
      %s23 = scalar_select %p20, %s21, %s22
      %p26 = pneg %p20
      %p27 = scmp.eq.s32.totalorder %s11, 7
      %p28 = por %p26, %p27
      %p29 = scmp.ne.s32.totalorder %s21, %s24
      %p30 = scmp.eq.s32.totalorder %s11, 0
      %p31 = por %p29, %p30
      %p32 = scmp.ne.s32.totalorder %s21, %s24
      %p33 = scmp.eq.s32.totalorder %s16, 7
      %p34 = por %p32, %p33
      %p35 = scmp.ne.s32.totalorder %s24, %s25
      %p36 = scmp.eq.s32.totalorder %s16, 0
      %p37 = por %p35, %p36
      %p38 = scmp.ne.s32.totalorder %s24, %s25
      %p39 = scmp.eq.s32.totalorder %s17, 7
      %p40 = por %p38, %p39
      %p42 = scmp.ne.s32.totalorder %s25, %s41
      %p43 = scmp.eq.s32.totalorder %s17, 0
      %p44 = por %p42, %p43
      %s46 = sadd.s32 %s45, 1
      %p49 = scmp.eq.s32.totalorder %s11, 7
      %p50 = scmp.ne.s32.totalorder %s45, %s47
      %p51 = scmp.eq.s32.totalorder %s11, 0
      %p52 = por %p50, %p51
      %p53 = scmp.ne.s32.totalorder %s45, %s47
      %p54 = scmp.eq.s32.totalorder %s16, 7
      %p55 = por %p53, %p54
      %p56 = scmp.ne.s32.totalorder %s47, %s48
      %p57 = scmp.eq.s32.totalorder %s16, 0
      %p58 = por %p56, %p57
      %p59 = scmp.ne.s32.totalorder %s47, %s48
      %p60 = scmp.eq.s32.totalorder %s17, 7
      %p61 = por %p59, %p60
      %p63 = scmp.ne.s32.totalorder %s48, %s62
      %p64 = scmp.eq.s32.totalorder %s17, 0
      %p65 = por %p63, %p64
      %s66 = ssub.s32 %s11, %s18
      %p67 = scmp.eq.s32.totalorder %s66, 0
      %s69 = sadd.s32 %s68, 1
      %s70 = scalar_select %p67, %s68, %s69
      %p73 = pneg %p67
      %p74 = scmp.eq.s32.totalorder %s11, 7
      %p75 = por %p73, %p74
      %p76 = scmp.ne.s32.totalorder %s68, %s71
      %p77 = scmp.eq.s32.totalorder %s11, 0
      %p78 = por %p76, %p77
      %p79 = scmp.ne.s32.totalorder %s68, %s71
      %p80 = scmp.eq.s32.totalorder %s16, 7
      %p81 = por %p79, %p80
      %p82 = scmp.ne.s32.totalorder %s71, %s72
      %p83 = scmp.eq.s32.totalorder %s16, 0
      %p84 = por %p82, %p83
      %p85 = scmp.ne.s32.totalorder %s71, %s72
      %p86 = scmp.eq.s32.totalorder %s17, 7
      %p87 = por %p85, %p86
      %p89 = scmp.ne.s32.totalorder %s72, %s88
      %p90 = scmp.eq.s32.totalorder %s17, 0
      %p91 = por %p89, %p90
      %p92 = scmp.le.s32.totalorder 1, %s11
      %p93 = scmp.lt.s32.totalorder %s11, 9
      %p94 = pnand %p92, %p93
      %p95 = pneg %p94
      // Predicated region
      $region9: #{tpu_custom_call.1} parent=5 // pred_check
        _
      $region10: #{tpu_custom_call.1} parent=5 // pred_check_branch
        %97 = sbr.rel (%p94) target = $region12
      $region11: #{tpu_custom_call.1} parent=5 // pred_region
        %s98 = ssub.s32 %s11, 1
        // Predicated region
        $region13: #{tpu_custom_call.1} parent=11 // pred_check
          %p99 = pneg %p58
        $region14: #{tpu_custom_call.1} parent=11 // pred_check_branch
          %101 = sbr.rel (%p99) target = $region16
        $region15: #{tpu_custom_call.1} parent=11 // pred_region
          _
        $region16: #{tpu_custom_call.1} parent=11 // pred_fallthru
          _
      $region12: #{tpu_custom_call.1} parent=5 // pred_fallthru
        _
      %p102 = scmp.lt.s32.totalorder %s11, 8
      // Predicated region
      $region17: #{tpu_custom_call.1} parent=5 // pred_check
        %p103 = pneg %p102
      $region18: #{tpu_custom_call.1} parent=5 // pred_check_branch
        %105 = sbr.rel (%p103) target = $region20
      $region19: #{tpu_custom_call.1} parent=5 // pred_region
        // Predicated region
        $region21: #{tpu_custom_call.1} parent=19 // pred_check
          %p106 = pneg %p31
        $region22: #{tpu_custom_call.1} parent=19 // pred_check_branch
          %108 = sbr.rel (%p106) target = $region24
        $region23: #{tpu_custom_call.1} parent=19 // pred_region
          %s109 = smul.u32 8, %s11
          %p110 = scmp.lt.s32.totalorder %s109, 63
          %s111 = scalar_select %p110, %s109, 63
          %s112 = smul.addr %s111, 4
          %s113 = scalar_lea.vmem %s0, %s112
          %s114 = smul.u32 8, %s11
        $region24: #{tpu_custom_call.1} parent=19 // pred_fallthru
          _
      $region20: #{tpu_custom_call.1} parent=5 // pred_fallthru
        _
      %p115 = scmp.le.s32.totalorder 1, %s11
      %p116 = scmp.lt.s32.totalorder %s11, 9
      %p117 = pnand %p115, %p116
      %p118 = pneg %p117
      // Predicated region
      $region25: #{tpu_custom_call.1} parent=5 // pred_check
        _
      $region26: #{tpu_custom_call.1} parent=5 // pred_check_branch
        %120 = sbr.rel (%p117) target = $region28
      $region27: #{tpu_custom_call.1} parent=5 // pred_region
        %s121 = ssub.s32 %s11, 1
        %s122 = smul.u32 8, %s16
        %p123 = scmp.lt.s32.totalorder %s122, 63
        %s124 = scalar_select %p123, %s122, 63
        %s125 = smul.addr %s124, 4
        %s126 = scalar_lea.vmem %s0, %s125
        %p127 = pneg %p37
        %p128 = pneg %p34
        %p129 = pneg %p58
        %p130 = pneg %p55
        %p131 = pneg %p84
        %p132 = pneg %p81
        %s133 = sand.u32 %s71, 1
        %s134 = scalar_lea.sflag [#allocation3], %s133
        %s135 = sand.u32 %s71, 1
        %s136 = smul.addr %s135, 128
        %s137 = scalar_lea.vmem [#allocation2], %s136
        %s138 = smul.u32 8, %s16
        %p139 = scmp.lt.s32.totalorder %s138, 63
        %s140 = scalar_select %p139, %s138, 63
        %s141 = smul.addr %s140, 4
        %s142 = scalar_lea.vmem %s0, %s141
        %s143 = smul.u32 8, %s16
        %s144 = smul.u32 8, %s16
        %v146 = vld [vmem:[%s142] sm:$0xf]
        %v147 = vld [vmem:[%s142 + $0x4] sm:$0xf]
        %v148 = vld [vmem:[%s142 + $0x8] sm:$0xf]
        %v149 = vld [vmem:[%s142 + $0xc] sm:$0xf]
        %v150 = vld [vmem:[%s142 + $0x10] sm:$0xf]
        %v151 = vld [vmem:[%s142 + $0x14] sm:$0xf]
        %v152 = vld [vmem:[%s142 + $0x18] sm:$0xf]
        %v153 = vld [vmem:[%s142 + $0x1c] sm:$0xf]
        %v154 = vld [vmem:[%s1] sm:$0xff]
        %v155 = vld [vmem:[%s1 + $0x8] sm:$0xff]
        %v156 = vld [vmem:[%s1 + $0x10] sm:$0xff]
        %v157 = vld [vmem:[%s1 + $0x18] sm:$0xff]
        %v158 = vld [vmem:[%s1 + $0x20] sm:$0xff]
        %v159 = vld [vmem:[%s1 + $0x28] sm:$0xff]
        %v160 = vld [vmem:[%s1 + $0x30] sm:$0xff]
        %v161 = vld [vmem:[%s1 + $0x38] sm:$0xff]
        %v170 = vunpack.c.l.b16 %v146
        %v171 = vunpack.c.l.b16 %v147
        %v172 = vunpack.c.l.b16 %v148
        %v173 = vunpack.c.l.b16 %v149
        %v174 = vunpack.c.l.b16 %v150
        %v175 = vunpack.c.l.b16 %v151
        %v176 = vunpack.c.l.b16 %v152
        %v177 = vunpack.c.l.b16 %v153
        %v178 = vpack.c.b16 %v171, %v170
        %v179 = vpack.c.b16 %v173, %v172
        %v180 = vpack.c.b16 %v175, %v174
        %v181 = vpack.c.b16 %v177, %v176
        %v190 = vunpack.c.l.b16 %v154
        %v191 = vunpack.c.h.b16 %v154
        %v192 = vunpack.c.l.b16 %v155
        %v193 = vunpack.c.h.b16 %v155
        %v194 = vunpack.c.l.b16 %v156
        %v195 = vunpack.c.h.b16 %v156
        %v196 = vunpack.c.l.b16 %v157
        %v197 = vunpack.c.h.b16 %v157
        %v198 = vunpack.c.l.b16 %v158
        %v199 = vunpack.c.h.b16 %v158
        %v200 = vunpack.c.l.b16 %v159
        %v201 = vunpack.c.h.b16 %v159
        %v202 = vunpack.c.l.b16 %v160
        %v203 = vunpack.c.h.b16 %v160
        %v204 = vunpack.c.l.b16 %v161
        %v205 = vunpack.c.h.b16 %v161
        %v206 = vpack.c.b16 %v192, %v190
        %v207 = vpack.c.b16 %v193, %v191
        %v208 = vpack.c.b16 %v196, %v194
        %v209 = vpack.c.b16 %v197, %v195
        %v210 = vpack.c.b16 %v200, %v198
        %v211 = vpack.c.b16 %v201, %v199
        %v212 = vpack.c.b16 %v204, %v202
        %v213 = vpack.c.b16 %v205, %v203
        %vm222 = vcmask 523264
        %v224 = vsel %vm222, %v178, 0
        %v227 = vsel %vm222, %v179, 0
        %v230 = vsel %vm222, %v180, 0
        %v233 = vsel %vm222, %v181, 0
        %235 = vmatpush.bf16.msra.mxu0 0
        %236 = vmatpush.bf16.msra.mxu0 0
        %237 = vmatpush.bf16.msra.mxu0 0
        %238 = vmatpush.bf16.msra.mxu0 0
        %239 = vmatpush.bf16.msra.mxu0 %v212
        %240 = vmatpush.bf16.msra.mxu0 %v210
        %241 = vmatpush.bf16.msra.mxu0 %v208
        %242 = vmatpush.bf16.msra.mxu0 %v206
        %243 = vmatmul.bf16.gmra.mxu0 %v224
        %v244 = vpop.f32.mrf.mxu0
        %v245 = vadd.f32 0.0, %v244
        %v246 = vpop.f32.mrf.mxu0
        %v247 = vadd.f32 0.0, %v246
        %248 = vmatmul.bf16.gmra.mxu0 %v227
        %v249 = vpop.f32.mrf.mxu0
        %v250 = vadd.f32 0.0, %v249
        %v251 = vpop.f32.mrf.mxu0
        %v252 = vadd.f32 0.0, %v251
        %253 = vmatmul.bf16.gmra.mxu0 %v230
        %v254 = vpop.f32.mrf.mxu0
        %v255 = vadd.f32 0.0, %v254
        %v256 = vpop.f32.mrf.mxu0
        %v257 = vadd.f32 0.0, %v256
        %258 = vmatmul.bf16.gmra.mxu0 %v233
        %v259 = vpop.f32.mrf.mxu0
        %v260 = vadd.f32 0.0, %v259
        %v261 = vpop.f32.mrf.mxu0
        %v262 = vadd.f32 0.0, %v261
        %263 = vdwg.mxu0
        %264 = vmatpush.bf16.msra.mxu0 0
        %265 = vmatpush.bf16.msra.mxu0 0
        %266 = vmatpush.bf16.msra.mxu0 0
        %267 = vmatpush.bf16.msra.mxu0 0
        %268 = vmatpush.bf16.msra.mxu0 %v213
        %269 = vmatpush.bf16.msra.mxu0 %v211
        %270 = vmatpush.bf16.msra.mxu0 %v209
        %271 = vmatpush.bf16.msra.mxu0 %v207
        %272 = vmatmul.bf16.gmra.mxu0 %v224
        %v273 = vpop.f32.mrf.mxu0
        %v274 = vadd.f32 0.0, %v273
        %v275 = vpop.f32.mrf.mxu0
        %v276 = vadd.f32 0.0, %v275
        %277 = vmatmul.bf16.gmra.mxu0 %v227
        %v278 = vpop.f32.mrf.mxu0
        %v279 = vadd.f32 0.0, %v278
        %v280 = vpop.f32.mrf.mxu0
        %v281 = vadd.f32 0.0, %v280
        %282 = vmatmul.bf16.gmra.mxu0 %v230
        %v283 = vpop.f32.mrf.mxu0
        %v284 = vadd.f32 0.0, %v283
        %v285 = vpop.f32.mrf.mxu0
        %v286 = vadd.f32 0.0, %v285
        %287 = vmatmul.bf16.gmra.mxu0 %v233
        %v288 = vpop.f32.mrf.mxu0
        %v289 = vadd.f32 0.0, %v288
        %v290 = vpop.f32.mrf.mxu0
        %v291 = vadd.f32 0.0, %v290
        %292 = vdwg.mxu0
        %293 = vst [vmem:[%s137] sm:$0xff] %v245
        %294 = vst [vmem:[%s137 + $0x8] sm:$0xff] %v274
        %295 = vst [vmem:[%s137 + $0x10] sm:$0xff] %v247
        %296 = vst [vmem:[%s137 + $0x18] sm:$0xff] %v276
        %297 = vst [vmem:[%s137 + $0x20] sm:$0xff] %v250
        %298 = vst [vmem:[%s137 + $0x28] sm:$0xff] %v279
        %299 = vst [vmem:[%s137 + $0x30] sm:$0xff] %v252
        %300 = vst [vmem:[%s137 + $0x38] sm:$0xff] %v281
        %301 = vst [vmem:[%s137 + $0x40] sm:$0xff] %v255
        %302 = vst [vmem:[%s137 + $0x48] sm:$0xff] %v284
        %303 = vst [vmem:[%s137 + $0x50] sm:$0xff] %v257
        %304 = vst [vmem:[%s137 + $0x58] sm:$0xff] %v286
        %305 = vst [vmem:[%s137 + $0x60] sm:$0xff] %v260
        %306 = vst [vmem:[%s137 + $0x68] sm:$0xff] %v289
        %307 = vst [vmem:[%s137 + $0x70] sm:$0xff] %v262
        %308 = vst [vmem:[%s137 + $0x78] sm:$0xff] %v291
        %s309 = sand.u32 %s71, 1
        %s310 = scalar_lea.sflag [#allocation3], %s309
        %s311 = sand.u32 %s71, 1
        %s312 = smul.addr %s311, 128
        %s313 = scalar_lea.vmem [#allocation2], %s312
        // Predicated region
        $region29: #{tpu_custom_call.1} parent=27 // pred_check
          %p314 = pneg %p81
        $region30: #{tpu_custom_call.1} parent=27 // pred_check_branch
          %316 = sbr.rel (%p314) target = $region32
        $region31: #{tpu_custom_call.1} parent=27 // pred_region
          %s317 = smul.u32 8, %s16
          %319 = vsyncadd %s310, 0
          %s320 = smul.addr %s317, 2
          %s321 = smul.addr %s320, 8
          %s322 = scalar_lea.hbm %s2, %s321
          %s323 = sshll.u32 %s313, 4
          %s324 = int_to_ptr.vmem [resolvable:$true] %s323
          %s325 = sshll.u32 %s322, 4
          %s326 = int_to_ptr.hbm [resolvable:$true] %s325
          %331 = dma.vmem_to_hbm [thread:$0]  %s324, 2048, %s326, %s310, 256, 256, 16
        $region32: #{tpu_custom_call.1} parent=27 // pred_fallthru
          _
      $region28: #{tpu_custom_call.1} parent=5 // pred_fallthru
        _
      %p332 = scmp.le.s32.totalorder 2, %s11
      // Predicated region
      $region33: #{tpu_custom_call.1} parent=5 // pred_check
        %p333 = pneg %p332
      $region34: #{tpu_custom_call.1} parent=5 // pred_check_branch
        %335 = sbr.rel (%p333) target = $region36
      $region35: #{tpu_custom_call.1} parent=5 // pred_region
        %s336 = ssub.s32 %s11, 2
        // Predicated region
        $region37: #{tpu_custom_call.1} parent=35 // pred_check
          %p337 = pneg %p87
        $region38: #{tpu_custom_call.1} parent=35 // pred_check_branch
          %339 = sbr.rel (%p337) target = $region40
        $region39: #{tpu_custom_call.1} parent=35 // pred_region
          %s340 = sand.u32 %s72, 1
          %s341 = scalar_lea.sflag [#allocation3], %s340
          %s342 = sand.u32 %s72, 1
          %s343 = smul.addr %s342, 128
          %s344 = scalar_lea.vmem [#allocation2], %s343
          %346 = dma.done %s341, 2048
        $region40: #{tpu_custom_call.1} parent=35 // pred_fallthru
          _
      $region36: #{tpu_custom_call.1} parent=5 // pred_fallthru
        _
    $region6: #{tpu_custom_call.1} parent=1 // loop_footer
      %s15 = sadd.s32 1, %s11
    $region7: #{tpu_custom_call.1} parent=1 // loop_footer_branch
      %10 = sbr.rel target = $region3
    $region8: #{tpu_custom_call.1} parent=1 // loop_exit
      _
    %347 = vsyncpa [#allocation3], 1
    %s348 = scalar_lea.sflag [#allocation3], 1
    %349 = vsyncpa %s348, 1

</llo_original>
